<compile_context>
chip_gen: v7x
topology: tpu7x:2x2x1
jax: 0.10.0
libtpu: 0.0.40
codegen_flags: <defaults>
</compile_context>

<pallas_src>
import jax
import jax.numpy as jnp
import numpy as np
from jax.experimental import pallas as pl
from jax.experimental.pallas import tpu as pltpu

# ----------------------------- problem sizes -----------------------------
B = 2             # batch
C_IN = 4          # input channels
H = W = 16        # spatial
P = H * W         # positions per image (256)
C_FEAT = 32       # basenet feature dim (_in_features)
BOTTLENECK = 16   # bottleneck_dim
N_CLASS = 8       # n_class
BN_EPS = 1e-5

B_PAD = 8         # sublane-padded pooled / output rows
LANES = 128       # lane-dense width for all post-pool intermediates and the output


# ------------------------------ Pallas kernel -----------------------------
def joint_kernel(patches_ref,    # (B*P, 9*C_IN + 1)  im2col patches + ones column, bf16
                 wc_ref,         # (9*C_IN + 1, C_FEAT)  conv weights with bias row, bf16
                 wb_ref,         # (C_FEAT, LANES)  bottleneck Linear (BN folded), lane-padded, bf16
                 wf_ref,         # (LANES, LANES)   fc weights, zero-padded, bf16
                 bias_ref,       # (2, LANES) f32: row 0 = fused bottleneck bias, row 1 = fc bias
                 out_ref):       # (B_PAD, LANES) f32, lane-dense; sliced to (B, n_class) outside
    # --- basenet: 3x3 conv (bias folded via ones-column) as one bf16 MXU matmul + f32 ReLU ---
    conv = jnp.dot(patches_ref[...], wc_ref[...],
                   preferred_element_type=jnp.float32)                 # (B*P, C_FEAT) f32
    conv = jnp.maximum(conv, 0.0)

    # --- global average pool over H*W as a bf16 MXU matmul against an in-kernel-generated
    #     block-diagonal 1/P mask (no HBM constant, no extra DMA); 1/256 is exact in bf16 ---
    row = jax.lax.broadcasted_iota(jnp.int32, (B_PAD, B * P), 0)
    col = jax.lax.broadcasted_iota(jnp.int32, (B_PAD, B * P), 1)
    band = (col >= row * P) & (col < (row + 1) * P)                    # rows >= B are all-zero
    pool = jnp.where(band, 1.0 / P, 0.0).astype(jnp.bfloat16)          # (B_PAD, B*P)
    feat = jnp.dot(pool, conv.astype(jnp.bfloat16),
                   preferred_element_type=jnp.float32)                 # (B_PAD, C_FEAT)

    biases = bias_ref[...]                                             # (2, LANES) f32

    # --- bottleneck: Linear with BatchNorm1d(eval) folded in, + ReLU (full 128-lane width;
    #     lanes >= BOTTLENECK are zero weight + zero bias -> stay zero through the ReLU) ---
    h = jnp.dot(feat.astype(jnp.bfloat16), wb_ref[...],
                preferred_element_type=jnp.float32)                    # (B_PAD, LANES)
    h = jnp.maximum(h + biases[0:1, :], 0.0)

    # --- fc: Linear(bottleneck -> n_class), lane-dense output (lanes >= N_CLASS stay zero) ---
    out = jnp.dot(h.astype(jnp.bfloat16), wf_ref[...],
                  preferred_element_type=jnp.float32) + biases[1:2, :]
    out_ref[...] = out.astype(out_ref.dtype)
    # NOTE: rows B..B_PAD-1 of out_ref are fc(ReLU(fused_bias)) (pool rows are zero but biases
    #       still apply); they are sliced off in the wrapper — never reduce over padded rows.


# ------------------------------ forward wrapper -----------------------------
@jax.jit
def joint_forward(x_nchw, params):
    """Forward pass of JOINT (eval / source-only path). Returns (source_output, loss)."""
    # ---- glue (fused under jit): NCHW -> NHWC, im2col for the 3x3 'same' conv ----
    x = jnp.transpose(x_nchw, (0, 2, 3, 1)).astype(jnp.float32)              # (B,H,W,C)
    xp = jnp.pad(x, ((0, 0), (1, 1), (1, 1), (0, 0)))
    taps = [xp[:, kh:kh + H, kw:kw + W, :] for kh in range(3) for kw in range(3)]
    ones_tap = jnp.ones((B, H, W, 1), jnp.float32)
    patches_aug = jnp.concatenate(taps + [ones_tap], axis=-1) \
                     .reshape(B * P, 9 * C_IN + 1).astype(jnp.bfloat16)      # (512, 37)

    # conv weights with the bias folded in as an extra row; bf16 operands for the MXU
    wc = params['conv_w'].reshape(9 * C_IN, C_FEAT)
    wc_aug = jnp.concatenate([wc, params['conv_b'].reshape(1, C_FEAT)], 0
                             ).astype(jnp.bfloat16)                          # (37, 32)

    # fold BatchNorm1d (eval running stats) into the bottleneck Linear, pad lane-dense
    scale = params['bn_gamma'] * jax.lax.rsqrt(params['bn_var'] + BN_EPS)    # (BOTTLENECK,)
    wb_fused = params['bottleneck_w'].T * scale[None, :]                     # (C_FEAT, BOTTLENECK)
    bb_fused = (params['bottleneck_b'] - params['bn_mean']) * scale + params['bn_beta']
    wb_pad = jnp.pad(wb_fused, ((0, 0), (0, LANES - BOTTLENECK))
                     ).astype(jnp.bfloat16)                                  # (32, 128)

    # fc weights padded lane-dense on both dims; pack the two remaining f32 bias vectors
    wf_pad = jnp.pad(params['fc_w'].T,
                     ((0, LANES - BOTTLENECK), (0, LANES - N_CLASS))
                     ).astype(jnp.bfloat16)                                  # (128, 128)
    biases = jnp.stack([jnp.pad(bb_fused, (0, LANES - BOTTLENECK)),
                        jnp.pad(params['fc_b'], (0, LANES - N_CLASS))], 0)   # (2, 128) f32

    vmem = pl.BlockSpec(memory_space=pltpu.MemorySpace.VMEM)
    out_pad = pl.pallas_call(
        joint_kernel,
        out_shape=jax.ShapeDtypeStruct((B_PAD, LANES), jnp.float32),
        in_specs=[vmem] * 5,
        out_specs=vmem,
    )(patches_aug, wc_aug, wb_pad, wf_pad, biases)

    source_output = out_pad[:B, :N_CLASS]
    loss = jnp.float32(0.0)   # eval path / no target: loss stays 0 (matches the module)
    return source_output, loss


# ------------------------------ reference (plain JAX, f32) ------------------------------
def joint_reference(x_nchw, params):
    x = jnp.transpose(x_nchw, (0, 2, 3, 1)).astype(jnp.float32)
    xp = jnp.pad(x, ((0, 0), (1, 1), (1, 1), (0, 0)))
    taps = [xp[:, kh:kh + H, kw:kw + W, :] for kh in range(3) for kw in range(3)]
    patches = jnp.stack(taps, axis=3).reshape(B, H * W, 9 * C_IN)
    conv = jnp.einsum('bpk,kc->bpc', patches, params['conv_w'].reshape(9 * C_IN, C_FEAT))
    conv = jnp.maximum(conv + params['conv_b'][None, None, :], 0.0)
    feat = jnp.mean(conv, axis=1)
    h = feat @ params['bottleneck_w'].T + params['bottleneck_b']
    h = (h - params['bn_mean']) * (params['bn_gamma'] / jnp.sqrt(params['bn_var'] + BN_EPS)) \
        + params['bn_beta']
    h = jnp.maximum(h, 0.0)
    return h @ params['fc_w'].T + params['fc_b']


# ------------------------------ deterministic params ------------------------------
def init_params(key):
    k_conv, k_bott, k_fc = jax.random.split(key, 3)
    return {
        # synthetic basenet conv (stand-in for network_dict[basenet])
        'conv_w': 0.05 * jax.random.normal(k_conv, (3, 3, C_IN, C_FEAT), jnp.float32),
        'conv_b': jnp.zeros((C_FEAT,), jnp.float32),
        # bottleneck[0]: Linear, weight ~ N(0, 0.005), bias = 0.1   (as in __init__)
        'bottleneck_w': 0.005 * jax.random.normal(k_bott, (BOTTLENECK, C_FEAT), jnp.float32),
        'bottleneck_b': jnp.full((BOTTLENECK,), 0.1, jnp.float32),
        # bottleneck[1]: BatchNorm1d defaults (eval mode running stats)
        'bn_gamma': jnp.ones((BOTTLENECK,), jnp.float32),
        'bn_beta': jnp.zeros((BOTTLENECK,), jnp.float32),
        'bn_mean': jnp.zeros((BOTTLENECK,), jnp.float32),
        'bn_var': jnp.ones((BOTTLENECK,), jnp.float32),
        # fc: weight ~ N(0, 0.01), bias = 0                          (as in __init__)
        'fc_w': 0.01 * jax.random.normal(k_fc, (N_CLASS, BOTTLENECK), jnp.float32),
        'fc_b': jnp.zeros((N_CLASS,), jnp.float32),
    }


if __name__ == "__main__":
    key = jax.random.PRNGKey(0)
    k_params, k_x = jax.random.split(key)
    params = init_params(k_params)
    x = jax.random.normal(k_x, (B, C_IN, H, W), jnp.float32)   # NCHW, like the PyTorch module

    out, loss = joint_forward(x, params)
    out = jax.block_until_ready(out)

    ref = jax.block_until_ready(joint_reference(x, params))
    # every matmul now uses bf16 operands (f32 accumulation) while the reference is pure f32,
    # and the module's tiny init scales (0.005 / 0.01) make |out| ~ 1e-3..1e-2 => tolerance
    # sized for the expected bf16 rounding chain, still far below any real-bug deviation.
    np.testing.assert_allclose(np.asarray(out), np.asarray(ref), rtol=1e-2, atol=2e-4)
    assert out.shape == (B, N_CLASS)
    assert float(loss) == 0.0

    print("KERNEL_OK")
</pallas_src>

<mosaic_0001>
module attributes {stable_mosaic.version = 11 : i64} {
  func.func @joint_kernel(%arg0: memref<512x37xbf16, #tpu.memory_space<vmem>>, %arg1: memref<37x32xbf16, #tpu.memory_space<vmem>>, %arg2: memref<32x128xbf16, #tpu.memory_space<vmem>>, %arg3: memref<128x128xbf16, #tpu.memory_space<vmem>>, %arg4: memref<2x128xf32, #tpu.memory_space<vmem>>, %arg5: memref<8x128xf32, #tpu.memory_space<vmem>>) attributes {dimension_semantics = [], scalar_prefetch = 0 : i64, scratch_operands = 0 : i64, tpu.core_type = #tpu.core_type<tc>} {
    %c0 = arith.constant 0 : index
    %c0_0 = arith.constant 0 : index
    %0 = vector.load %arg0[%c0, %c0_0] : memref<512x37xbf16, #tpu.memory_space<vmem>>, vector<512x37xbf16>
    %c0_1 = arith.constant 0 : index
    %c0_2 = arith.constant 0 : index
    %1 = vector.load %arg1[%c0_1, %c0_2] : memref<37x32xbf16, #tpu.memory_space<vmem>>, vector<37x32xbf16>
    %cst = arith.constant dense<0.000000e+00> : vector<512x32xf32>
    %2 = tpu.matmul %0, %1, %cst {dimension_numbers = #tpu.dot_dimension_numbers<[1], [0], [0], [1], [0, 0, 1, 1], [], []>} : vector<512x37xbf16>, vector<37x32xbf16>, vector<512x32xf32> -> vector<512x32xf32>
    %cst_3 = arith.constant 0.000000e+00 : f32
    %3 = vector.broadcast %cst_3 : f32 to vector<512x32xf32>
    %4 = arith.maximumf %2, %3 : vector<512x32xf32>
    %5 = tpu.iota {dimensions = array<i32: 0>} : vector<8x512xi32>
    %6 = tpu.iota {dimensions = array<i32: 1>} : vector<8x512xi32>
    %c256_i32 = arith.constant 256 : i32
    %7 = vector.broadcast %c256_i32 : i32 to vector<8x512xi32>
    %8 = arith.muli %5, %7 : vector<8x512xi32>
    %9 = arith.cmpi sge, %6, %8 : vector<8x512xi32>
    %c1_i32 = arith.constant 1 : i32
    %10 = vector.broadcast %c1_i32 : i32 to vector<8x512xi32>
    %11 = arith.addi %5, %10 : vector<8x512xi32>
    %c256_i32_4 = arith.constant 256 : i32
    %12 = vector.broadcast %c256_i32_4 : i32 to vector<8x512xi32>
    %13 = arith.muli %11, %12 : vector<8x512xi32>
    %14 = arith.cmpi slt, %6, %13 : vector<8x512xi32>
    %15 = arith.andi %9, %14 : vector<8x512xi1>
    %cst_5 = arith.constant 3.906250e-03 : f32
    %cst_6 = arith.constant 0.000000e+00 : f32
    %16 = vector.broadcast %cst_5 : f32 to vector<8x512xf32>
    %17 = vector.broadcast %cst_6 : f32 to vector<8x512xf32>
    %18 = arith.select %15, %16, %17 : vector<8x512xi1>, vector<8x512xf32>
    %19 = arith.truncf %18 : vector<8x512xf32> to vector<8x512xbf16>
    %20 = arith.truncf %4 : vector<512x32xf32> to vector<512x32xbf16>
    %cst_7 = arith.constant dense<0.000000e+00> : vector<8x32xf32>
    %21 = tpu.matmul %19, %20, %cst_7 {dimension_numbers = #tpu.dot_dimension_numbers<[1], [0], [0], [1], [0, 0, 1, 1], [], []>} : vector<8x512xbf16>, vector<512x32xbf16>, vector<8x32xf32> -> vector<8x32xf32>
    %c0_8 = arith.constant 0 : index
    %c0_9 = arith.constant 0 : index
    %22 = vector.load %arg4[%c0_8, %c0_9] : memref<2x128xf32, #tpu.memory_space<vmem>>, vector<2x128xf32>
    %23 = arith.truncf %21 : vector<8x32xf32> to vector<8x32xbf16>
    %c0_10 = arith.constant 0 : index
    %c0_11 = arith.constant 0 : index
    %24 = vector.load %arg2[%c0_10, %c0_11] : memref<32x128xbf16, #tpu.memory_space<vmem>>, vector<32x128xbf16>
    %cst_12 = arith.constant dense<0.000000e+00> : vector<8x128xf32>
    %25 = tpu.matmul %23, %24, %cst_12 {dimension_numbers = #tpu.dot_dimension_numbers<[1], [0], [0], [1], [0, 0, 1, 1], [], []>} : vector<8x32xbf16>, vector<32x128xbf16>, vector<8x128xf32> -> vector<8x128xf32>
    %26 = vector.extract_strided_slice %22 {offsets = [0, 0], sizes = [1, 128], strides = [1, 1]} : vector<2x128xf32> to vector<1x128xf32>
    %27 = vector.broadcast %26 : vector<1x128xf32> to vector<8x128xf32>
    %28 = arith.addf %25, %27 : vector<8x128xf32>
    %cst_13 = arith.constant 0.000000e+00 : f32
    %29 = vector.broadcast %cst_13 : f32 to vector<8x128xf32>
    %30 = arith.maximumf %28, %29 : vector<8x128xf32>
    %31 = arith.truncf %30 : vector<8x128xf32> to vector<8x128xbf16>
    %c0_14 = arith.constant 0 : index
    %c0_15 = arith.constant 0 : index
    %32 = vector.load %arg3[%c0_14, %c0_15] : memref<128x128xbf16, #tpu.memory_space<vmem>>, vector<128x128xbf16>
    %cst_16 = arith.constant dense<0.000000e+00> : vector<8x128xf32>
    %33 = tpu.matmul %31, %32, %cst_16 {dimension_numbers = #tpu.dot_dimension_numbers<[1], [0], [0], [1], [0, 0, 1, 1], [], []>} : vector<8x128xbf16>, vector<128x128xbf16>, vector<8x128xf32> -> vector<8x128xf32>
    %34 = vector.extract_strided_slice %22 {offsets = [1, 0], sizes = [1, 128], strides = [1, 1]} : vector<2x128xf32> to vector<1x128xf32>
    %35 = vector.broadcast %34 : vector<1x128xf32> to vector<8x128xf32>
    %36 = arith.addf %33, %35 : vector<8x128xf32>
    %c0_17 = arith.constant 0 : index
    %c0_18 = arith.constant 0 : index
    %37 = vector.load %arg5[%c0_17, %c0_18] : memref<8x128xf32, #tpu.memory_space<vmem>>, vector<8x128xf32>
    tpu.vector_store %arg5[%c0_17, %c0_18], %36 {strides = array<i32>} : memref<8x128xf32, #tpu.memory_space<vmem>>, vector<8x128xf32>,
    return
  }
}

</mosaic_0001>

<llo_original>
// kernel: joint_forward.1
$region0: #{joint_forward.1}
  #allocation0 [shape = 'u32[]', space=smem, size = 0x4, offset = 0x4, fixed_abs, tag = 'smem constant byte address 0x4 - core index']
  #allocation1 [shape = 'u32[144,128]{1,0:T(1,128)}', space=vmem, size = 0x12000, scoped, tag = 'internal scratch']
  %s0 = inlined_call_operand.vmem [shape: bf16[512,37], index: 0, kind: input, shape index: {}]
  %s1 = inlined_call_operand.vmem [shape: bf16[37,32], index: 1, kind: input, shape index: {}]
  %s2 = inlined_call_operand.vmem [shape: bf16[32,128], index: 2, kind: input, shape index: {}]
  %s3 = inlined_call_operand.vmem [shape: bf16[128,128], index: 3, kind: input, shape index: {}]
  %s4 = inlined_call_operand.vmem [shape: f32[2,128], index: 4, kind: input, shape index: {}]
  %s5 = inlined_call_operand.vmem [shape: f32[8,128], index: 5, kind: output, shape index: {}]
  %s6 = sld [smem:[#allocation0]]
  $region30: #{joint_forward.1} parent=0
    _
  %s8 = ssub.s32 1, %s6
  %s9 = scalar_select 0, %s8, %s6
  // Predicated region
  $region2: #{joint_forward.1} parent=0 // pred_check
    _
  $region3: #{joint_forward.1} parent=0 // pred_check_branch
    %11 = sbr.rel (0) target = $region5
  $region4: #{joint_forward.1} parent=0 // pred_region
    _
  $region5: #{joint_forward.1} parent=0 // pred_fallthru
    _
  // Predicated region
  $region6: #{joint_forward.1} parent=0 // pred_check
    _
  $region7: #{joint_forward.1} parent=0 // pred_check_branch
    %13 = sbr.rel (0) target = $region9
  $region8: #{joint_forward.1} parent=0 // pred_region
    _
  $region9: #{joint_forward.1} parent=0 // pred_fallthru
    _
  // Predicated region
  $region10: #{joint_forward.1} parent=0 // pred_check
    _
  $region11: #{joint_forward.1} parent=0 // pred_check_branch
    %15 = sbr.rel (0) target = $region13
  $region12: #{joint_forward.1} parent=0 // pred_region
    _
  $region13: #{joint_forward.1} parent=0 // pred_fallthru
    _
  // Predicated region
  $region14: #{joint_forward.1} parent=0 // pred_check
    _
  $region15: #{joint_forward.1} parent=0 // pred_check_branch
    %17 = sbr.rel (0) target = $region17
  $region16: #{joint_forward.1} parent=0 // pred_region
    _
  $region17: #{joint_forward.1} parent=0 // pred_fallthru
    _
  // Predicated region
  $region18: #{joint_forward.1} parent=0 // pred_check
    _
  $region19: #{joint_forward.1} parent=0 // pred_check_branch
    %19 = sbr.rel (0) target = $region21
  $region20: #{joint_forward.1} parent=0 // pred_region
    _
  $region21: #{joint_forward.1} parent=0 // pred_fallthru
    _
  %v21 = vld [vmem:[%s0] sm:$0xf]
  %v22 = vld [vmem:[%s0 + $0x4] sm:$0xf]
  %v23 = vld [vmem:[%s0 + $0x8] sm:$0xf]
  %v24 = vld [vmem:[%s0 + $0xc] sm:$0xf]
  %v25 = vld [vmem:[%s0 + $0x10] sm:$0xf]
  %v26 = vld [vmem:[%s0 + $0x14] sm:$0xf]
  %v27 = vld [vmem:[%s0 + $0x18] sm:$0xf]
  %v28 = vld [vmem:[%s0 + $0x1c] sm:$0xf]
  %v29 = vld [vmem:[%s0 + $0x20] sm:$0xf]
  %v30 = vld [vmem:[%s0 + $0x24] sm:$0xf]
  %v31 = vld [vmem:[%s0 + $0x28] sm:$0xf]
  %v32 = vld [vmem:[%s0 + $0x2c] sm:$0xf]
  %v33 = vld [vmem:[%s0 + $0x30] sm:$0xf]
  %v34 = vld [vmem:[%s0 + $0x34] sm:$0xf]
  %v35 = vld [vmem:[%s0 + $0x38] sm:$0xf]
  %v36 = vld [vmem:[%s0 + $0x3c] sm:$0xf]
  %v37 = vld [vmem:[%s0 + $0x40] sm:$0xf]
  %v38 = vld [vmem:[%s0 + $0x44] sm:$0xf]
  %v39 = vld [vmem:[%s0 + $0x48] sm:$0xf]
  %v40 = vld [vmem:[%s0 + $0x4c] sm:$0xf]
  %v41 = vld [vmem:[%s0 + $0x50] sm:$0xf]
  %v42 = vld [vmem:[%s0 + $0x54] sm:$0xf]
  %v43 = vld [vmem:[%s0 + $0x58] sm:$0xf]
  %v44 = vld [vmem:[%s0 + $0x5c] sm:$0xf]
  %v45 = vld [vmem:[%s0 + $0x60] sm:$0xf]
  %v46 = vld [vmem:[%s0 + $0x64] sm:$0xf]
  %v47 = vld [vmem:[%s0 + $0x68] sm:$0xf]
  %v48 = vld [vmem:[%s0 + $0x6c] sm:$0xf]
  %v49 = vld [vmem:[%s0 + $0x70] sm:$0xf]
  %v50 = vld [vmem:[%s0 + $0x74] sm:$0xf]
  %v51 = vld [vmem:[%s0 + $0x78] sm:$0xf]
  %v52 = vld [vmem:[%s0 + $0x7c] sm:$0xf]
  %v53 = vld [vmem:[%s0 + $0x80] sm:$0xf]
  %v54 = vld [vmem:[%s0 + $0x84] sm:$0xf]
  %v55 = vld [vmem:[%s0 + $0x88] sm:$0xf]
  %v56 = vld [vmem:[%s0 + $0x8c] sm:$0xf]
  %v57 = vld [vmem:[%s0 + $0x90] sm:$0xf]
  %v58 = vld [vmem:[%s0 + $0x94] sm:$0xf]
  %v59 = vld [vmem:[%s0 + $0x98] sm:$0xf]
  %v60 = vld [vmem:[%s0 + $0x9c] sm:$0xf]
  %v61 = vld [vmem:[%s0 + $0xa0] sm:$0xf]
  %v62 = vld [vmem:[%s0 + $0xa4] sm:$0xf]
  %v63 = vld [vmem:[%s0 + $0xa8] sm:$0xf]
  %v64 = vld [vmem:[%s0 + $0xac] sm:$0xf]
  %v65 = vld [vmem:[%s0 + $0xb0] sm:$0xf]
  %v66 = vld [vmem:[%s0 + $0xb4] sm:$0xf]
  %v67 = vld [vmem:[%s0 + $0xb8] sm:$0xf]
  %v68 = vld [vmem:[%s0 + $0xbc] sm:$0xf]
  %v69 = vld [vmem:[%s0 + $0xc0] sm:$0xf]
  %v70 = vld [vmem:[%s0 + $0xc4] sm:$0xf]
  %v71 = vld [vmem:[%s0 + $0xc8] sm:$0xf]
  %v72 = vld [vmem:[%s0 + $0xcc] sm:$0xf]
  %v73 = vld [vmem:[%s0 + $0xd0] sm:$0xf]
  %v74 = vld [vmem:[%s0 + $0xd4] sm:$0xf]
  %v75 = vld [vmem:[%s0 + $0xd8] sm:$0xf]
  %v76 = vld [vmem:[%s0 + $0xdc] sm:$0xf]
  %v77 = vld [vmem:[%s0 + $0xe0] sm:$0xf]
  %v78 = vld [vmem:[%s0 + $0xe4] sm:$0xf]
  %v79 = vld [vmem:[%s0 + $0xe8] sm:$0xf]
  %v80 = vld [vmem:[%s0 + $0xec] sm:$0xf]
  %v81 = vld [vmem:[%s0 + $0xf0] sm:$0xf]
  %v82 = vld [vmem:[%s0 + $0xf4] sm:$0xf]
  %v83 = vld [vmem:[%s0 + $0xf8] sm:$0xf]
  %v84 = vld [vmem:[%s0 + $0xfc] sm:$0xf]
  %v85 = vld [vmem:[%s1] sm:$0xf]
  %v86 = vld [vmem:[%s1 + $0x4] sm:$0xf]
  %v87 = vld [vmem:[%s1 + $0x8] sm:$0xf]
  %v88 = vld [vmem:[%s1 + $0xc] sm:$0xf]
  %v89 = vld [vmem:[%s1 + $0x10] sm:$0x7]
  %v154 = vunpack.c.l.b16 %v21
  %v155 = vunpack.c.l.b16 %v22
  %v156 = vunpack.c.l.b16 %v23
  %v157 = vunpack.c.l.b16 %v24
  %v158 = vunpack.c.l.b16 %v25
  %v159 = vunpack.c.l.b16 %v26
  %v160 = vunpack.c.l.b16 %v27
  %v161 = vunpack.c.l.b16 %v28
  %v162 = vunpack.c.l.b16 %v29
  %v163 = vunpack.c.l.b16 %v30
  %v164 = vunpack.c.l.b16 %v31
  %v165 = vunpack.c.l.b16 %v32
  %v166 = vunpack.c.l.b16 %v33
  %v167 = vunpack.c.l.b16 %v34
  %v168 = vunpack.c.l.b16 %v35
  %v169 = vunpack.c.l.b16 %v36
  %v170 = vunpack.c.l.b16 %v37
  %v171 = vunpack.c.l.b16 %v38
  %v172 = vunpack.c.l.b16 %v39
  %v173 = vunpack.c.l.b16 %v40
  %v174 = vunpack.c.l.b16 %v41
  %v175 = vunpack.c.l.b16 %v42
  %v176 = vunpack.c.l.b16 %v43
  %v177 = vunpack.c.l.b16 %v44
  %v178 = vunpack.c.l.b16 %v45
  %v179 = vunpack.c.l.b16 %v46
  %v180 = vunpack.c.l.b16 %v47
  %v181 = vunpack.c.l.b16 %v48
  %v182 = vunpack.c.l.b16 %v49
  %v183 = vunpack.c.l.b16 %v50
  %v184 = vunpack.c.l.b16 %v51
  %v185 = vunpack.c.l.b16 %v52
  %v186 = vunpack.c.l.b16 %v53
  %v187 = vunpack.c.l.b16 %v54
  %v188 = vunpack.c.l.b16 %v55
  %v189 = vunpack.c.l.b16 %v56
  %v190 = vunpack.c.l.b16 %v57
  %v191 = vunpack.c.l.b16 %v58
  %v192 = vunpack.c.l.b16 %v59
  %v193 = vunpack.c.l.b16 %v60
  %v194 = vunpack.c.l.b16 %v61
  %v195 = vunpack.c.l.b16 %v62
  %v196 = vunpack.c.l.b16 %v63
  %v197 = vunpack.c.l.b16 %v64
  %v198 = vunpack.c.l.b16 %v65
  %v199 = vunpack.c.l.b16 %v66
  %v200 = vunpack.c.l.b16 %v67
  %v201 = vunpack.c.l.b16 %v68
  %v202 = vunpack.c.l.b16 %v69
  %v203 = vunpack.c.l.b16 %v70
  %v204 = vunpack.c.l.b16 %v71
  %v205 = vunpack.c.l.b16 %v72
  %v206 = vunpack.c.l.b16 %v73
  %v207 = vunpack.c.l.b16 %v74
  %v208 = vunpack.c.l.b16 %v75
  %v209 = vunpack.c.l.b16 %v76
  %v210 = vunpack.c.l.b16 %v77
  %v211 = vunpack.c.l.b16 %v78
  %v212 = vunpack.c.l.b16 %v79
  %v213 = vunpack.c.l.b16 %v80
  %v214 = vunpack.c.l.b16 %v81
  %v215 = vunpack.c.l.b16 %v82
  %v216 = vunpack.c.l.b16 %v83
  %v217 = vunpack.c.l.b16 %v84
  %v218 = vpack.c.b16 %v155, %v154
  %v219 = vpack.c.b16 %v157, %v156
  %v220 = vpack.c.b16 %v159, %v158
  %v221 = vpack.c.b16 %v161, %v160
  %v222 = vpack.c.b16 %v163, %v162
  %v223 = vpack.c.b16 %v165, %v164
  %v224 = vpack.c.b16 %v167, %v166
  %v225 = vpack.c.b16 %v169, %v168
  %v226 = vpack.c.b16 %v171, %v170
  %v227 = vpack.c.b16 %v173, %v172
  %v228 = vpack.c.b16 %v175, %v174
  %v229 = vpack.c.b16 %v177, %v176
  %v230 = vpack.c.b16 %v179, %v178
  %v231 = vpack.c.b16 %v181, %v180
  %v232 = vpack.c.b16 %v183, %v182
  %v233 = vpack.c.b16 %v185, %v184
  %v234 = vpack.c.b16 %v187, %v186
  %v235 = vpack.c.b16 %v189, %v188
  %v236 = vpack.c.b16 %v191, %v190
  %v237 = vpack.c.b16 %v193, %v192
  %v238 = vpack.c.b16 %v195, %v194
  %v239 = vpack.c.b16 %v197, %v196
  %v240 = vpack.c.b16 %v199, %v198
  %v241 = vpack.c.b16 %v201, %v200
  %v242 = vpack.c.b16 %v203, %v202
  %v243 = vpack.c.b16 %v205, %v204
  %v244 = vpack.c.b16 %v207, %v206
  %v245 = vpack.c.b16 %v209, %v208
  %v246 = vpack.c.b16 %v211, %v210
  %v247 = vpack.c.b16 %v213, %v212
  %v248 = vpack.c.b16 %v215, %v214
  %v249 = vpack.c.b16 %v217, %v216
  %v255 = vunpack.c.l.b16 %v85
  %v256 = vunpack.c.l.b16 %v86
  %v257 = vunpack.c.l.b16 %v87
  %v258 = vunpack.c.l.b16 %v88
  %v259 = vunpack.c.l.b16 %v89
  %v260 = vpack.c.b16 %v256, %v255
  %v261 = vpack.c.b16 %v258, %v257
  %v262 = vpack.c.b16 %v259, %v259
  %vm265 = vcmask 302080
  %v267 = vsel %vm265, %v218, 0
  %v270 = vsel %vm265, %v219, 0
  %v273 = vsel %vm265, %v220, 0
  %v276 = vsel %vm265, %v221, 0
  %v279 = vsel %vm265, %v222, 0
  %v282 = vsel %vm265, %v223, 0
  %v285 = vsel %vm265, %v224, 0
  %v288 = vsel %vm265, %v225, 0
  %v291 = vsel %vm265, %v226, 0
  %v294 = vsel %vm265, %v227, 0
  %v297 = vsel %vm265, %v228, 0
  %v300 = vsel %vm265, %v229, 0
  %v303 = vsel %vm265, %v230, 0
  %v306 = vsel %vm265, %v231, 0
  %v309 = vsel %vm265, %v232, 0
  %v312 = vsel %vm265, %v233, 0
  %v315 = vsel %vm265, %v234, 0
  %v318 = vsel %vm265, %v235, 0
  %v321 = vsel %vm265, %v236, 0
  %v324 = vsel %vm265, %v237, 0
  %v327 = vsel %vm265, %v238, 0
  %v330 = vsel %vm265, %v239, 0
  %v333 = vsel %vm265, %v240, 0
  %v336 = vsel %vm265, %v241, 0
  %v339 = vsel %vm265, %v242, 0
  %v342 = vsel %vm265, %v243, 0
  %v345 = vsel %vm265, %v244, 0
  %v348 = vsel %vm265, %v245, 0
  %v351 = vsel %vm265, %v246, 0
  %v354 = vsel %vm265, %v247, 0
  %v357 = vsel %vm265, %v248, 0
  %v360 = vsel %vm265, %v249, 0
  %vm362 = vcmask 1041408
  %vm363 = vcmask 1042432
  %v364 = vsel %vm362, 4294967295, 65535
  %v365 = vsel %vm363, %v364, 0
  %v367 = vand.u32 %v262, %v365
  %369 = vmatprep.subr.bf16.mxu0 0
  %370 = vmatpush1.bf16.msra.mxu0 %v260
  %371 = vmatprep.subr.bf16.mxu0 0
  %372 = vmatpush1.bf16.msra.mxu0 %v261
  %373 = vmatprep.subr.bf16.mxu0 0
  %374 = vmatpush1.bf16.msra.mxu0 %v367
  %375 = vmatprep.subr.bf16.mxu0 0
  %376 = vmatpush1.bf16.msra.mxu0 0
  %377 = vmatprep.subr.bf16.mxu0 0
  %378 = vmatpush1.bf16.msra.mxu0 0
  %379 = vmatprep.subr.bf16.mxu0 0
  %380 = vmatpush1.bf16.msra.mxu0 0
  %381 = vmatprep.subr.bf16.mxu0 0
  %382 = vmatpush1.bf16.msra.mxu0 0
  %383 = vmatprep.subr.bf16.mxu0 0
  %384 = vmatpush1.bf16.msra.mxu0 0
  %385 = vmatprep.subr.bf16.mxu0 0
  %386 = vmatpush1.bf16.msra.mxu0 0
  %387 = vmatprep.subr.bf16.mxu0 0
  %388 = vmatpush1.bf16.msra.mxu0 0
  %389 = vmatprep.subr.bf16.mxu0 0
  %390 = vmatpush1.bf16.msra.mxu0 0
  %391 = vmatprep.subr.bf16.mxu0 0
  %392 = vmatpush1.bf16.msra.mxu0 0
  %393 = vmatprep.subr.bf16.mxu0 0
  %394 = vmatpush1.bf16.msra.mxu0 0
  %395 = vmatprep.subr.bf16.mxu0 0
  %396 = vmatpush1.bf16.msra.mxu0 0
  %397 = vmatprep.subr.bf16.mxu0 0
  %398 = vmatpush1.bf16.msra.mxu0 0
  %399 = vmatprep.subr.bf16.mxu0 0
  %400 = vmatpush1.bf16.msra.mxu0 0
  %401 = vmatprep.mubr.bf16.mxu0 0
  %402 = vmatmul.mubr.bf16.gmra.mrb[0].mxu0 %v267
  %v403 = vpop.f32.mrb[0].mxu0
  %v404 = vadd.f32 0.0, %v403
  %v405 = vpop.f32.mrb[0].mxu0
  %v406 = vpop.f32.mrb[0].mxu0
  %v407 = vadd.f32 0.0, %v406
  %v408 = vpop.f32.mrb[0].mxu0
  %409 = vmatprep.mubr.bf16.mxu0 0
  %410 = vmatmul.mubr.bf16.gmra.mrb[0].mxu0 %v270
  %v411 = vpop.f32.mrb[0].mxu0
  %v412 = vadd.f32 0.0, %v411
  %v413 = vpop.f32.mrb[0].mxu0
  %v414 = vpop.f32.mrb[0].mxu0
  %v415 = vadd.f32 0.0, %v414
  %v416 = vpop.f32.mrb[0].mxu0
  %417 = vmatprep.mubr.bf16.mxu0 0
  %418 = vmatmul.mubr.bf16.gmra.mrb[0].mxu0 %v273
  %v419 = vpop.f32.mrb[0].mxu0
  %v420 = vadd.f32 0.0, %v419
  %v421 = vpop.f32.mrb[0].mxu0
  %v422 = vpop.f32.mrb[0].mxu0
  %v423 = vadd.f32 0.0, %v422
  %v424 = vpop.f32.mrb[0].mxu0
  %425 = vmatprep.mubr.bf16.mxu0 0
  %426 = vmatmul.mubr.bf16.gmra.mrb[0].mxu0 %v276
  %v427 = vpop.f32.mrb[0].mxu0
  %v428 = vadd.f32 0.0, %v427
  %v429 = vpop.f32.mrb[0].mxu0
  %v430 = vpop.f32.mrb[0].mxu0
  %v431 = vadd.f32 0.0, %v430
  %v432 = vpop.f32.mrb[0].mxu0
  %433 = vmatprep.mubr.bf16.mxu0 0
  %434 = vmatmul.mubr.bf16.gmra.mrb[0].mxu0 %v279
  %v435 = vpop.f32.mrb[0].mxu0
  %v436 = vadd.f32 0.0, %v435
  %v437 = vpop.f32.mrb[0].mxu0
  %v438 = vpop.f32.mrb[0].mxu0
  %v439 = vadd.f32 0.0, %v438
  %v440 = vpop.f32.mrb[0].mxu0
  %441 = vmatprep.mubr.bf16.mxu0 0
  %442 = vmatmul.mubr.bf16.gmra.mrb[0].mxu0 %v282
  %v443 = vpop.f32.mrb[0].mxu0
  %v444 = vadd.f32 0.0, %v443
  %v445 = vpop.f32.mrb[0].mxu0
  %v446 = vpop.f32.mrb[0].mxu0
  %v447 = vadd.f32 0.0, %v446
  %v448 = vpop.f32.mrb[0].mxu0
  %449 = vmatprep.mubr.bf16.mxu0 0
  %450 = vmatmul.mubr.bf16.gmra.mrb[0].mxu0 %v285
  %v451 = vpop.f32.mrb[0].mxu0
  %v452 = vadd.f32 0.0, %v451
  %v453 = vpop.f32.mrb[0].mxu0
  %v454 = vpop.f32.mrb[0].mxu0
  %v455 = vadd.f32 0.0, %v454
  %v456 = vpop.f32.mrb[0].mxu0
  %457 = vmatprep.mubr.bf16.mxu0 0
  %458 = vmatmul.mubr.bf16.gmra.mrb[0].mxu0 %v288
  %v459 = vpop.f32.mrb[0].mxu0
  %v460 = vadd.f32 0.0, %v459
  %v461 = vpop.f32.mrb[0].mxu0
  %v462 = vpop.f32.mrb[0].mxu0
  %v463 = vadd.f32 0.0, %v462
  %v464 = vpop.f32.mrb[0].mxu0
  %465 = vmatprep.mubr.bf16.mxu0 0
  %466 = vmatmul.mubr.bf16.gmra.mrb[0].mxu0 %v291
  %v467 = vpop.f32.mrb[0].mxu0
  %v468 = vadd.f32 0.0, %v467
  %v469 = vpop.f32.mrb[0].mxu0
  %v470 = vpop.f32.mrb[0].mxu0
  %v471 = vadd.f32 0.0, %v470
  %v472 = vpop.f32.mrb[0].mxu0
  %473 = vmatprep.mubr.bf16.mxu0 0
  %474 = vmatmul.mubr.bf16.gmra.mrb[0].mxu0 %v294
  %v475 = vpop.f32.mrb[0].mxu0
  %v476 = vadd.f32 0.0, %v475
  %v477 = vpop.f32.mrb[0].mxu0
  %v478 = vpop.f32.mrb[0].mxu0
  %v479 = vadd.f32 0.0, %v478
  %v480 = vpop.f32.mrb[0].mxu0
  %481 = vmatprep.mubr.bf16.mxu0 0
  %482 = vmatmul.mubr.bf16.gmra.mrb[0].mxu0 %v297
  %v483 = vpop.f32.mrb[0].mxu0
  %v484 = vadd.f32 0.0, %v483
  %v485 = vpop.f32.mrb[0].mxu0
  %v486 = vpop.f32.mrb[0].mxu0
  %v487 = vadd.f32 0.0, %v486
  %v488 = vpop.f32.mrb[0].mxu0
  %489 = vmatprep.mubr.bf16.mxu0 0
  %490 = vmatmul.mubr.bf16.gmra.mrb[0].mxu0 %v300
  %v491 = vpop.f32.mrb[0].mxu0
  %v492 = vadd.f32 0.0, %v491
  %v493 = vpop.f32.mrb[0].mxu0
  %v494 = vpop.f32.mrb[0].mxu0
  %v495 = vadd.f32 0.0, %v494
  %v496 = vpop.f32.mrb[0].mxu0
  %497 = vmatprep.mubr.bf16.mxu0 0
  %498 = vmatmul.mubr.bf16.gmra.mrb[0].mxu0 %v303
  %v499 = vpop.f32.mrb[0].mxu0
  %v500 = vadd.f32 0.0, %v499
  %v501 = vpop.f32.mrb[0].mxu0
  %v502 = vpop.f32.mrb[0].mxu0
  %v503 = vadd.f32 0.0, %v502
  %v504 = vpop.f32.mrb[0].mxu0
  %505 = vmatprep.mubr.bf16.mxu0 0
  %506 = vmatmul.mubr.bf16.gmra.mrb[0].mxu0 %v306
  %v507 = vpop.f32.mrb[0].mxu0
  %v508 = vadd.f32 0.0, %v507
  %v509 = vpop.f32.mrb[0].mxu0
  %v510 = vpop.f32.mrb[0].mxu0
  %v511 = vadd.f32 0.0, %v510
  %v512 = vpop.f32.mrb[0].mxu0
  %513 = vmatprep.mubr.bf16.mxu0 0
  %514 = vmatmul.mubr.bf16.gmra.mrb[0].mxu0 %v309
  %v515 = vpop.f32.mrb[0].mxu0
  %v516 = vadd.f32 0.0, %v515
  %v517 = vpop.f32.mrb[0].mxu0
  %v518 = vpop.f32.mrb[0].mxu0
  %v519 = vadd.f32 0.0, %v518
  %v520 = vpop.f32.mrb[0].mxu0
  %521 = vmatprep.mubr.bf16.mxu0 0
  %522 = vmatmul.mubr.bf16.gmra.mrb[0].mxu0 %v312
  %v523 = vpop.f32.mrb[0].mxu0
  %v524 = vadd.f32 0.0, %v523
  %v525 = vpop.f32.mrb[0].mxu0
  %v526 = vpop.f32.mrb[0].mxu0
  %v527 = vadd.f32 0.0, %v526
  %v528 = vpop.f32.mrb[0].mxu0
  %529 = vmatprep.mubr.bf16.mxu0 0
  %530 = vmatmul.mubr.bf16.gmra.mrb[0].mxu0 %v315
  %v531 = vpop.f32.mrb[0].mxu0
  %v532 = vadd.f32 0.0, %v531
  %v533 = vpop.f32.mrb[0].mxu0
  %v534 = vpop.f32.mrb[0].mxu0
  %v535 = vadd.f32 0.0, %v534
  %v536 = vpop.f32.mrb[0].mxu0
  %537 = vmatprep.mubr.bf16.mxu0 0
  %538 = vmatmul.mubr.bf16.gmra.mrb[0].mxu0 %v318
  %v539 = vpop.f32.mrb[0].mxu0
  %v540 = vadd.f32 0.0, %v539
  %v541 = vpop.f32.mrb[0].mxu0
  %v542 = vpop.f32.mrb[0].mxu0
  %v543 = vadd.f32 0.0, %v542
  %v544 = vpop.f32.mrb[0].mxu0
  %545 = vmatprep.mubr.bf16.mxu0 0
  %546 = vmatmul.mubr.bf16.gmra.mrb[0].mxu0 %v321
  %v547 = vpop.f32.mrb[0].mxu0
  %v548 = vadd.f32 0.0, %v547
  %v549 = vpop.f32.mrb[0].mxu0
  %v550 = vpop.f32.mrb[0].mxu0
  %v551 = vadd.f32 0.0, %v550
  %v552 = vpop.f32.mrb[0].mxu0
  %553 = vmatprep.mubr.bf16.mxu0 0
  %554 = vmatmul.mubr.bf16.gmra.mrb[0].mxu0 %v324
  %v555 = vpop.f32.mrb[0].mxu0
  %v556 = vadd.f32 0.0, %v555
  %v557 = vpop.f32.mrb[0].mxu0
  %v558 = vpop.f32.mrb[0].mxu0
  %v559 = vadd.f32 0.0, %v558
  %v560 = vpop.f32.mrb[0].mxu0
  %561 = vmatprep.mubr.bf16.mxu0 0
  %562 = vmatmul.mubr.bf16.gmra.mrb[0].mxu0 %v327
  %v563 = vpop.f32.mrb[0].mxu0
  %v564 = vadd.f32 0.0, %v563
  %v565 = vpop.f32.mrb[0].mxu0
  %v566 = vpop.f32.mrb[0].mxu0
  %v567 = vadd.f32 0.0, %v566
  %v568 = vpop.f32.mrb[0].mxu0
  %569 = vmatprep.mubr.bf16.mxu0 0
  %570 = vmatmul.mubr.bf16.gmra.mrb[0].mxu0 %v330
  %v571 = vpop.f32.mrb[0].mxu0
  %v572 = vadd.f32 0.0, %v571
  %v573 = vpop.f32.mrb[0].mxu0
  %v574 = vpop.f32.mrb[0].mxu0
  %v575 = vadd.f32 0.0, %v574
  %v576 = vpop.f32.mrb[0].mxu0
  %577 = vmatprep.mubr.bf16.mxu0 0
  %578 = vmatmul.mubr.bf16.gmra.mrb[0].mxu0 %v333
  %v579 = vpop.f32.mrb[0].mxu0
  %v580 = vadd.f32 0.0, %v579
  %v581 = vpop.f32.mrb[0].mxu0
  %v582 = vpop.f32.mrb[0].mxu0
  %v583 = vadd.f32 0.0, %v582
  %v584 = vpop.f32.mrb[0].mxu0
  %585 = vmatprep.mubr.bf16.mxu0 0
  %586 = vmatmul.mubr.bf16.gmra.mrb[0].mxu0 %v336
  %v587 = vpop.f32.mrb[0].mxu0
  %v588 = vadd.f32 0.0, %v587
  %v589 = vpop.f32.mrb[0].mxu0
  %v590 = vpop.f32.mrb[0].mxu0
  %v591 = vadd.f32 0.0, %v590
  %v592 = vpop.f32.mrb[0].mxu0
  %593 = vmatprep.mubr.bf16.mxu0 0
  %594 = vmatmul.mubr.bf16.gmra.mrb[0].mxu0 %v339
  %v595 = vpop.f32.mrb[0].mxu0
  %v596 = vadd.f32 0.0, %v595
  %v597 = vpop.f32.mrb[0].mxu0
  %v598 = vpop.f32.mrb[0].mxu0
  %v599 = vadd.f32 0.0, %v598
  %v600 = vpop.f32.mrb[0].mxu0
  %601 = vmatprep.mubr.bf16.mxu0 0
  %602 = vmatmul.mubr.bf16.gmra.mrb[0].mxu0 %v342
  %v603 = vpop.f32.mrb[0].mxu0
  %v604 = vadd.f32 0.0, %v603
  %v605 = vpop.f32.mrb[0].mxu0
  %v606 = vpop.f32.mrb[0].mxu0
  %v607 = vadd.f32 0.0, %v606
  %v608 = vpop.f32.mrb[0].mxu0
  %609 = vmatprep.mubr.bf16.mxu0 0
  %610 = vmatmul.mubr.bf16.gmra.mrb[0].mxu0 %v345
  %v611 = vpop.f32.mrb[0].mxu0
  %v612 = vadd.f32 0.0, %v611
  %v613 = vpop.f32.mrb[0].mxu0
  %v614 = vpop.f32.mrb[0].mxu0
  %v615 = vadd.f32 0.0, %v614
  %v616 = vpop.f32.mrb[0].mxu0
  %617 = vmatprep.mubr.bf16.mxu0 0
  %618 = vmatmul.mubr.bf16.gmra.mrb[0].mxu0 %v348
  %v619 = vpop.f32.mrb[0].mxu0
  %v620 = vadd.f32 0.0, %v619
  %v621 = vpop.f32.mrb[0].mxu0
  %v622 = vpop.f32.mrb[0].mxu0
  %v623 = vadd.f32 0.0, %v622
  %v624 = vpop.f32.mrb[0].mxu0
  %625 = vmatprep.mubr.bf16.mxu0 0
  %626 = vmatmul.mubr.bf16.gmra.mrb[0].mxu0 %v351
  %v627 = vpop.f32.mrb[0].mxu0
  %v628 = vadd.f32 0.0, %v627
  %v629 = vpop.f32.mrb[0].mxu0
  %v630 = vpop.f32.mrb[0].mxu0
  %v631 = vadd.f32 0.0, %v630
  %v632 = vpop.f32.mrb[0].mxu0
  %633 = vmatprep.mubr.bf16.mxu0 0
  %634 = vmatmul.mubr.bf16.gmra.mrb[0].mxu0 %v354
  %v635 = vpop.f32.mrb[0].mxu0
  %v636 = vadd.f32 0.0, %v635
  %v637 = vpop.f32.mrb[0].mxu0
  %v638 = vpop.f32.mrb[0].mxu0
  %v639 = vadd.f32 0.0, %v638
  %v640 = vpop.f32.mrb[0].mxu0
  %641 = vmatprep.mubr.bf16.mxu0 0
  %642 = vmatmul.mubr.bf16.gmra.mrb[0].mxu0 %v357
  %v643 = vpop.f32.mrb[0].mxu0
  %v644 = vadd.f32 0.0, %v643
  %v645 = vpop.f32.mrb[0].mxu0
  %v646 = vpop.f32.mrb[0].mxu0
  %v647 = vadd.f32 0.0, %v646
  %v648 = vpop.f32.mrb[0].mxu0
  %649 = vmatprep.mubr.bf16.mxu0 0
  %650 = vmatmul.mubr.bf16.gmra.mrb[0].mxu0 %v360
  %v651 = vpop.f32.mrb[0].mxu0
  %v652 = vadd.f32 0.0, %v651
  %v653 = vpop.f32.mrb[0].mxu0
  %v654 = vpop.f32.mrb[0].mxu0
  %v655 = vadd.f32 0.0, %v654
  %v656 = vpop.f32.mrb[0].mxu0
  %657 = vdwg.mxu0
  %v658 = vmax.f32 %v404, 0.0
  %v659 = vmax.f32 %v407, 0.0
  %v660 = vmax.f32 %v412, 0.0
  %v661 = vmax.f32 %v415, 0.0
  %v662 = vmax.f32 %v420, 0.0
  %v663 = vmax.f32 %v423, 0.0
  %v664 = vmax.f32 %v428, 0.0
  %v665 = vmax.f32 %v431, 0.0
  %v666 = vmax.f32 %v436, 0.0
  %v667 = vmax.f32 %v439, 0.0
  %v668 = vmax.f32 %v444, 0.0
  %v669 = vmax.f32 %v447, 0.0
  %v670 = vmax.f32 %v452, 0.0
  %v671 = vmax.f32 %v455, 0.0
  %v672 = vmax.f32 %v460, 0.0
  %v673 = vmax.f32 %v463, 0.0
  %v674 = vmax.f32 %v468, 0.0
  %v675 = vmax.f32 %v471, 0.0
  %v676 = vmax.f32 %v476, 0.0
  %v677 = vmax.f32 %v479, 0.0
  %v678 = vmax.f32 %v484, 0.0
  %v679 = vmax.f32 %v487, 0.0
  %v680 = vmax.f32 %v492, 0.0
  %v681 = vmax.f32 %v495, 0.0
  %v682 = vmax.f32 %v500, 0.0
  %v683 = vmax.f32 %v503, 0.0
  %v684 = vmax.f32 %v508, 0.0
  %v685 = vmax.f32 %v511, 0.0
  %v686 = vmax.f32 %v516, 0.0
  %v687 = vmax.f32 %v519, 0.0
  %v688 = vmax.f32 %v524, 0.0
  %v689 = vmax.f32 %v527, 0.0
  %v690 = vmax.f32 %v532, 0.0
  %v691 = vmax.f32 %v535, 0.0
  %v692 = vmax.f32 %v540, 0.0
  %v693 = vmax.f32 %v543, 0.0
  %v694 = vmax.f32 %v548, 0.0
  %v695 = vmax.f32 %v551, 0.0
  %v696 = vmax.f32 %v556, 0.0
  %v697 = vmax.f32 %v559, 0.0
  %v698 = vmax.f32 %v564, 0.0
  %v699 = vmax.f32 %v567, 0.0
  %v700 = vmax.f32 %v572, 0.0
  %v701 = vmax.f32 %v575, 0.0
  %v702 = vmax.f32 %v580, 0.0
  %v703 = vmax.f32 %v583, 0.0
  %v704 = vmax.f32 %v588, 0.0
  %v705 = vmax.f32 %v591, 0.0
  %v706 = vmax.f32 %v596, 0.0
  %v707 = vmax.f32 %v599, 0.0
  %v708 = vmax.f32 %v604, 0.0
  %v709 = vmax.f32 %v607, 0.0
  %v710 = vmax.f32 %v612, 0.0
  %v711 = vmax.f32 %v615, 0.0
  %v712 = vmax.f32 %v620, 0.0
  %v713 = vmax.f32 %v623, 0.0
  %v714 = vmax.f32 %v628, 0.0
  %v715 = vmax.f32 %v631, 0.0
  %v716 = vmax.f32 %v636, 0.0
  %v717 = vmax.f32 %v639, 0.0
  %v718 = vmax.f32 %v644, 0.0
  %v719 = vmax.f32 %v647, 0.0
  %v720 = vmax.f32 %v652, 0.0
  %v721 = vmax.f32 %v655, 0.0
  %v722 = vlaneseq
  %v723 = vshrl.u32 %v722, 7
  %v724 = vlaneseq
  %v725 = vand.u32 %v724, 127
  %v726 = vadd.s32 %v725, 128
  %v727 = vadd.s32 %v725, 256
  %v728 = vadd.s32 %v725, 384
  %v729 = vmul.u32 %v723, 256
  %vm730 = vcmp.ge.s32.totalorder %v725, %v729
  %vm731 = vcmp.ge.s32.totalorder %v726, %v729
  %vm732 = vcmp.ge.s32.totalorder %v727, %v729
  %vm733 = vcmp.ge.s32.totalorder %v728, %v729
  %v734 = vadd.s32 %v723, 1
  %v735 = vmul.u32 %v734, 256
  %vm736 = vcmp.lt.s32.totalorder %v725, %v735
  %vm737 = vcmp.lt.s32.totalorder %v726, %v735
  %vm738 = vcmp.lt.s32.totalorder %v727, %v735
  %vm739 = vcmp.lt.s32.totalorder %v728, %v735
  %vm740 = vmand %vm730, %vm736
  %vm741 = vmand %vm731, %vm737
  %vm742 = vmand %vm732, %vm738
  %vm743 = vmand %vm733, %vm739
  %v744 = vsel %vm740, 0.00390625, 0.0
  %v745 = vsel %vm741, 0.00390625, 0.0
  %v746 = vsel %vm742, 0.00390625, 0.0
  %v747 = vsel %vm743, 0.00390625, 0.0
  %v748 = vpack.c.bf16 %v744, %v744
  %v749 = vpack.c.bf16 %v745, %v745
  %v750 = vpack.c.bf16 %v746, %v746
  %v751 = vpack.c.bf16 %v747, %v747
  %v752 = vpack.c.bf16 %v659, %v658
  %v753 = vpack.c.bf16 %v661, %v660
  %v754 = vpack.c.bf16 %v663, %v662
  %v755 = vpack.c.bf16 %v665, %v664
  %v756 = vpack.c.bf16 %v667, %v666
  %v757 = vpack.c.bf16 %v669, %v668
  %v758 = vpack.c.bf16 %v671, %v670
  %v759 = vpack.c.bf16 %v673, %v672
  %v760 = vpack.c.bf16 %v675, %v674
  %v761 = vpack.c.bf16 %v677, %v676
  %v762 = vpack.c.bf16 %v679, %v678
  %v763 = vpack.c.bf16 %v681, %v680
  %v764 = vpack.c.bf16 %v683, %v682
  %v765 = vpack.c.bf16 %v685, %v684
  %v766 = vpack.c.bf16 %v687, %v686
  %v767 = vpack.c.bf16 %v689, %v688
  %v768 = vpack.c.bf16 %v691, %v690
  %v769 = vpack.c.bf16 %v693, %v692
  %v770 = vpack.c.bf16 %v695, %v694
  %v771 = vpack.c.bf16 %v697, %v696
  %v772 = vpack.c.bf16 %v699, %v698
  %v773 = vpack.c.bf16 %v701, %v700
  %v774 = vpack.c.bf16 %v703, %v702
  %v775 = vpack.c.bf16 %v705, %v704
  %v776 = vpack.c.bf16 %v707, %v706
  %v777 = vpack.c.bf16 %v709, %v708
  %v778 = vpack.c.bf16 %v711, %v710
  %v779 = vpack.c.bf16 %v713, %v712
  %v780 = vpack.c.bf16 %v715, %v714
  %v781 = vpack.c.bf16 %v717, %v716
  %v782 = vpack.c.bf16 %v719, %v718
  %v783 = vpack.c.bf16 %v721, %v720
  %784 = vmatprep.subr.bf16.mxu0 0
  %785 = vmatpush1.bf16.msra.mxu0 %v752
  %786 = vmatprep.subr.bf16.mxu0 0
  %787 = vmatpush1.bf16.msra.mxu0 %v753
  %788 = vmatprep.subr.bf16.mxu0 0
  %789 = vmatpush1.bf16.msra.mxu0 %v754
  %790 = vmatprep.subr.bf16.mxu0 0
  %791 = vmatpush1.bf16.msra.mxu0 %v755
  %792 = vmatprep.subr.bf16.mxu0 0
  %793 = vmatpush1.bf16.msra.mxu0 %v756
  %794 = vmatprep.subr.bf16.mxu0 0
  %795 = vmatpush1.bf16.msra.mxu0 %v757
  %796 = vmatprep.subr.bf16.mxu0 0
  %797 = vmatpush1.bf16.msra.mxu0 %v758
  %798 = vmatprep.subr.bf16.mxu0 0
  %799 = vmatpush1.bf16.msra.mxu0 %v759
  %800 = vmatprep.subr.bf16.mxu0 0
  %801 = vmatpush1.bf16.msra.mxu0 %v760
  %802 = vmatprep.subr.bf16.mxu0 0
  %803 = vmatpush1.bf16.msra.mxu0 %v761
  %804 = vmatprep.subr.bf16.mxu0 0
  %805 = vmatpush1.bf16.msra.mxu0 %v762
  %806 = vmatprep.subr.bf16.mxu0 0
  %807 = vmatpush1.bf16.msra.mxu0 %v763
  %808 = vmatprep.subr.bf16.mxu0 0
  %809 = vmatpush1.bf16.msra.mxu0 %v764
  %810 = vmatprep.subr.bf16.mxu0 0
  %811 = vmatpush1.bf16.msra.mxu0 %v765
  %812 = vmatprep.subr.bf16.mxu0 0
  %813 = vmatpush1.bf16.msra.mxu0 %v766
  %814 = vmatprep.subr.bf16.mxu0 0
  %815 = vmatpush1.bf16.msra.mxu0 %v767
  %816 = vmatprep.mubr.bf16.mxu0 %v749
  %817 = vmatmul.mubr.bf16.gmra.mrb[0].mxu0 %v748
  %v818 = vpop.f32.mrb[0].mxu0
  %v819 = vadd.f32 0.0, %v818
  %v820 = vpop.f32.mrb[0].mxu0
  %v821 = vpop.f32.mrb[0].mxu0
  %v822 = vpop.f32.mrb[0].mxu0
  %823 = vdwg.mxu0
  %824 = vmatprep.subr.bf16.mxu0 0
  %825 = vmatpush1.bf16.msra.mxu0 %v768
  %826 = vmatprep.subr.bf16.mxu0 0
  %827 = vmatpush1.bf16.msra.mxu0 %v769
  %828 = vmatprep.subr.bf16.mxu0 0
  %829 = vmatpush1.bf16.msra.mxu0 %v770
  %830 = vmatprep.subr.bf16.mxu0 0
  %831 = vmatpush1.bf16.msra.mxu0 %v771
  %832 = vmatprep.subr.bf16.mxu0 0
  %833 = vmatpush1.bf16.msra.mxu0 %v772
  %834 = vmatprep.subr.bf16.mxu0 0
  %835 = vmatpush1.bf16.msra.mxu0 %v773
  %836 = vmatprep.subr.bf16.mxu0 0
  %837 = vmatpush1.bf16.msra.mxu0 %v774
  %838 = vmatprep.subr.bf16.mxu0 0
  %839 = vmatpush1.bf16.msra.mxu0 %v775
  %840 = vmatprep.subr.bf16.mxu0 0
  %841 = vmatpush1.bf16.msra.mxu0 %v776
  %842 = vmatprep.subr.bf16.mxu0 0
  %843 = vmatpush1.bf16.msra.mxu0 %v777
  %844 = vmatprep.subr.bf16.mxu0 0
  %845 = vmatpush1.bf16.msra.mxu0 %v778
  %846 = vmatprep.subr.bf16.mxu0 0
  %847 = vmatpush1.bf16.msra.mxu0 %v779
  %848 = vmatprep.subr.bf16.mxu0 0
  %849 = vmatpush1.bf16.msra.mxu0 %v780
  %850 = vmatprep.subr.bf16.mxu0 0
  %851 = vmatpush1.bf16.msra.mxu0 %v781
  %852 = vmatprep.subr.bf16.mxu0 0
  %853 = vmatpush1.bf16.msra.mxu0 %v782
  %854 = vmatprep.subr.bf16.mxu0 0
  %855 = vmatpush1.bf16.msra.mxu0 %v783
  %856 = vmatprep.mubr.bf16.mxu0 %v751
  %857 = vmatmul.mubr.bf16.gmra.mrb[0].mxu0 %v750
  %v858 = vpop.f32.mrb[0].mxu0
  %v859 = vadd.f32 %v819, %v858
  %v860 = vpop.f32.mrb[0].mxu0
  %v861 = vpop.f32.mrb[0].mxu0
  %v862 = vpop.f32.mrb[0].mxu0
  %863 = vdwg.mxu0
  %v864 = vld [vmem:[%s4] sm:$0x3]
  %v865 = vpack.c.bf16 %v859, %v859
  %v866 = vld [vmem:[%s2] sm:$0xf]
  %v867 = vld [vmem:[%s2 + $0x4] sm:$0xf]
  %v868 = vld [vmem:[%s2 + $0x8] sm:$0xf]
  %v869 = vld [vmem:[%s2 + $0xc] sm:$0xf]
  %v870 = vlaneseq
  %v871 = vshrl.u32 %v870, 7
  %v872 = vsub.s32 0, %v871
  %v873 = vrot.slane %v864, %v872
  %v878 = vunpack.c.l.b16 %v866
  %v879 = vunpack.c.l.b16 %v867
  %v880 = vunpack.c.l.b16 %v868
  %v881 = vunpack.c.l.b16 %v869
  %v882 = vpack.c.b16 %v879, %v878
  %v883 = vpack.c.b16 %v881, %v880
  %vm886 = vcmask 261120
  %v888 = vsel %vm886, %v865, 0
  %890 = vmatprep.subr.bf16.mxu0 0
  %891 = vmatpush1.bf16.msra.mxu0 %v882
  %892 = vmatprep.subr.bf16.mxu0 0
  %893 = vmatpush1.bf16.msra.mxu0 %v883
  %894 = vmatprep.subr.bf16.mxu0 0
  %895 = vmatpush1.bf16.msra.mxu0 0
  %896 = vmatprep.subr.bf16.mxu0 0
  %897 = vmatpush1.bf16.msra.mxu0 0
  %898 = vmatprep.subr.bf16.mxu0 0
  %899 = vmatpush1.bf16.msra.mxu0 0
  %900 = vmatprep.subr.bf16.mxu0 0
  %901 = vmatpush1.bf16.msra.mxu0 0
  %902 = vmatprep.subr.bf16.mxu0 0
  %903 = vmatpush1.bf16.msra.mxu0 0
  %904 = vmatprep.subr.bf16.mxu0 0
  %905 = vmatpush1.bf16.msra.mxu0 0
  %906 = vmatprep.subr.bf16.mxu0 0
  %907 = vmatpush1.bf16.msra.mxu0 0
  %908 = vmatprep.subr.bf16.mxu0 0
  %909 = vmatpush1.bf16.msra.mxu0 0
  %910 = vmatprep.subr.bf16.mxu0 0
  %911 = vmatpush1.bf16.msra.mxu0 0
  %912 = vmatprep.subr.bf16.mxu0 0
  %913 = vmatpush1.bf16.msra.mxu0 0
  %914 = vmatprep.subr.bf16.mxu0 0
  %915 = vmatpush1.bf16.msra.mxu0 0
  %916 = vmatprep.subr.bf16.mxu0 0
  %917 = vmatpush1.bf16.msra.mxu0 0
  %918 = vmatprep.subr.bf16.mxu0 0
  %919 = vmatpush1.bf16.msra.mxu0 0
  %920 = vmatprep.subr.bf16.mxu0 0
  %921 = vmatpush1.bf16.msra.mxu0 0
  %922 = vmatprep.mubr.bf16.mxu0 0
  %923 = vmatmul.mubr.bf16.gmra.mrb[0].mxu0 %v888
  %v924 = vpop.f32.mrb[0].mxu0
  %v925 = vadd.f32 %v873, %v924
  %v926 = vpop.f32.mrb[0].mxu0
  %v927 = vpop.f32.mrb[0].mxu0
  %v928 = vpop.f32.mrb[0].mxu0
  %929 = vdwg.mxu0
  %v930 = vmax.f32 %v925, 0.0
  %v931 = vpack.c.bf16 %v930, %v930
  %v932 = vld [vmem:[%s3] sm:$0xf]
  %v933 = vld [vmem:[%s3 + $0x4] sm:$0xf]
  %v934 = vld [vmem:[%s3 + $0x8] sm:$0xf]
  %v935 = vld [vmem:[%s3 + $0xc] sm:$0xf]
  %v936 = vld [vmem:[%s3 + $0x10] sm:$0xf]
  %v937 = vld [vmem:[%s3 + $0x14] sm:$0xf]
  %v938 = vld [vmem:[%s3 + $0x18] sm:$0xf]
  %v939 = vld [vmem:[%s3 + $0x1c] sm:$0xf]
  %v940 = vld [vmem:[%s3 + $0x20] sm:$0xf]
  %v941 = vld [vmem:[%s3 + $0x24] sm:$0xf]
  %v942 = vld [vmem:[%s3 + $0x28] sm:$0xf]
  %v943 = vld [vmem:[%s3 + $0x2c] sm:$0xf]
  %v944 = vld [vmem:[%s3 + $0x30] sm:$0xf]
  %v945 = vld [vmem:[%s3 + $0x34] sm:$0xf]
  %v946 = vld [vmem:[%s3 + $0x38] sm:$0xf]
  %v947 = vld [vmem:[%s3 + $0x3c] sm:$0xf]
  %v948 = vlaneseq
  %v949 = vshrl.u32 %v948, 7
  %v950 = vsub.s32 1, %v949
  %v951 = vrot.slane %v864, %v950
  %v968 = vunpack.c.l.b16 %v932
  %v969 = vunpack.c.l.b16 %v933
  %v970 = vunpack.c.l.b16 %v934
  %v971 = vunpack.c.l.b16 %v935
  %v972 = vunpack.c.l.b16 %v936
  %v973 = vunpack.c.l.b16 %v937
  %v974 = vunpack.c.l.b16 %v938
  %v975 = vunpack.c.l.b16 %v939
  %v976 = vunpack.c.l.b16 %v940
  %v977 = vunpack.c.l.b16 %v941
  %v978 = vunpack.c.l.b16 %v942
  %v979 = vunpack.c.l.b16 %v943
  %v980 = vunpack.c.l.b16 %v944
  %v981 = vunpack.c.l.b16 %v945
  %v982 = vunpack.c.l.b16 %v946
  %v983 = vunpack.c.l.b16 %v947
  %v984 = vpack.c.b16 %v969, %v968
  %v985 = vpack.c.b16 %v971, %v970
  %v986 = vpack.c.b16 %v973, %v972
  %v987 = vpack.c.b16 %v975, %v974
  %v988 = vpack.c.b16 %v977, %v976
  %v989 = vpack.c.b16 %v979, %v978
  %v990 = vpack.c.b16 %v981, %v980
  %v991 = vpack.c.b16 %v983, %v982
  %1000 = vmatprep.subr.bf16.mxu0 0
  %1001 = vmatpush1.bf16.msra.mxu0 %v984
  %1002 = vmatprep.subr.bf16.mxu0 0
  %1003 = vmatpush1.bf16.msra.mxu0 %v985
  %1004 = vmatprep.subr.bf16.mxu0 0
  %1005 = vmatpush1.bf16.msra.mxu0 %v986
  %1006 = vmatprep.subr.bf16.mxu0 0
  %1007 = vmatpush1.bf16.msra.mxu0 %v987
  %1008 = vmatprep.subr.bf16.mxu0 0
  %1009 = vmatpush1.bf16.msra.mxu0 %v988
  %1010 = vmatprep.subr.bf16.mxu0 0
  %1011 = vmatpush1.bf16.msra.mxu0 %v989
  %1012 = vmatprep.subr.bf16.mxu0 0
  %1013 = vmatpush1.bf16.msra.mxu0 %v990
  %1014 = vmatprep.subr.bf16.mxu0 0
  %1015 = vmatpush1.bf16.msra.mxu0 %v991
  %1016 = vmatprep.subr.bf16.mxu0 0
  %1017 = vmatpush1.bf16.msra.mxu0 0
  %1018 = vmatprep.subr.bf16.mxu0 0
  %1019 = vmatpush1.bf16.msra.mxu0 0
  %1020 = vmatprep.subr.bf16.mxu0 0
  %1021 = vmatpush1.bf16.msra.mxu0 0
  %1022 = vmatprep.subr.bf16.mxu0 0
  %1023 = vmatpush1.bf16.msra.mxu0 0
  %1024 = vmatprep.subr.bf16.mxu0 0
  %1025 = vmatpush1.bf16.msra.mxu0 0
  %1026 = vmatprep.subr.bf16.mxu0 0
  %1027 = vmatpush1.bf16.msra.mxu0 0
  %1028 = vmatprep.subr.bf16.mxu0 0
  %1029 = vmatpush1.bf16.msra.mxu0 0
  %1030 = vmatprep.subr.bf16.mxu0 0
  %1031 = vmatpush1.bf16.msra.mxu0 0
  %1032 = vmatprep.mubr.bf16.mxu0 0
  %1033 = vmatmul.mubr.bf16.gmra.mrb[0].mxu0 %v931
  %v1034 = vpop.f32.mrb[0].mxu0
  %v1035 = vadd.f32 %v951, %v1034
  %v1036 = vpop.f32.mrb[0].mxu0
  %v1037 = vpop.f32.mrb[0].mxu0
  %v1038 = vpop.f32.mrb[0].mxu0
  %1039 = vdwg.mxu0
  %1040 = vst [vmem:[%s5] sm:$0xff] %v1035
  // Predicated region
  $region22: #{joint_forward.1} parent=0 // pred_check
    _
  $region23: #{joint_forward.1} parent=0 // pred_check_branch
    %1042 = sbr.rel (0) target = $region25
  $region24: #{joint_forward.1} parent=0 // pred_region
    _
  $region25: #{joint_forward.1} parent=0 // pred_fallthru
    _
  // Predicated region
  $region26: #{joint_forward.1} parent=0 // pred_check
    _
  $region27: #{joint_forward.1} parent=0 // pred_check_branch
    %1044 = sbr.rel (0) target = $region29
  $region28: #{joint_forward.1} parent=0 // pred_region
    _
  $region29: #{joint_forward.1} parent=0 // pred_fallthru
    _

</llo_original>
